<compile_context>
chip_gen: v6e
topology: v6e:2x2x1
jax: 0.10.0
libtpu: 0.0.40
codegen_flags: <defaults>
</compile_context>

<pallas_src>
import functools

import jax
import jax.numpy as jnp
import numpy as np
from jax.experimental import pallas as pl
from jax.experimental.pallas import tpu as pltpu

BN_EPS = 1e-3   # EfficientNet BatchNorm eps
C_PAD = 128     # lane-dense padding for stem output channels


def _ceil_to(x, m):
    return ((x + m - 1) // m) * m


def _silu(x):
    # x * sigmoid(x) == 0.5 * x * (1 + tanh(x/2)): single EUP tanh per element
    # instead of exp + divide.
    return 0.5 * x * (1.0 + jnp.tanh(0.5 * x))


def _detector_kernel(patches_ref, convwT_ref, convb_ref, headw_ref, headb_ref,
                     logits_ref, acc_ref, *, chunk_s, nchunks, inv_s, pad_cols):
    s = pl.program_id(1)

    @pl.when(s == 0)
    def _init():
        acc_ref[...] = jnp.zeros_like(acc_ref)

    w = convwT_ref[...]        # (Cp, Kp) bf16, resident (BN folded on host)
    bias = convb_ref[...]      # (Cp, 1)  f32, resident
    cp = acc_ref.shape[0]

    # Inner chunk loop decouples the large DMA tile from the vreg/VMEM pressure
    # of the f32 feature temporary (Cp x chunk_s).
    def chunk_body(ci, pool):
        start = ci * chunk_s
        if not isinstance(start, int):
            start = pl.multiple_of(start, chunk_s)
        p = patches_ref[:, pl.ds(start, chunk_s)]                     # (Kp, chunk) bf16
        # Conv stem as an im2col matmul on the MXU (bf16 in, f32 accumulate).
        f = jnp.dot(w, p, preferred_element_type=jnp.float32) + bias  # (Cp, chunk) f32
        f = _silu(f)
        # Global-average-pool numerator: cross-lane (XLU) reduce.
        return pool + jnp.sum(f, axis=-1, keepdims=True)              # (Cp, 1)

    pool = jax.lax.fori_loop(0, nchunks, chunk_body,
                             jnp.zeros((cp, 1), jnp.float32),
                             unroll=nchunks <= 8)
    acc_ref[...] += pool

    # Classifier head once, on the final spatial tile of this batch element.
    @pl.when(s == pl.num_programs(1) - 1)
    def _finalize():
        pooled = acc_ref[...]
        if pad_cols:
            # Padded (all-zero) patch columns each contributed silu(bias);
            # subtract them exactly instead of masking every grid step.
            pooled = pooled - pad_cols * _silu(bias)
        pooled = pooled * inv_s                                        # (Cp, 1)
        logits_ref[...] = (jnp.sum(headw_ref[...] * pooled, axis=0, keepdims=True)
                           + headb_ref[...])                           # (1, NC)


def detector_forward(img_nchw, params, *, tile_s=None, chunk_s=None):
    """Forward pass. img_nchw: [N, Cin, H, W] float32 (PyTorch layout)."""
    conv_w_hwio = params["conv_w"]       # [kh, kw, Cin, C]
    gamma = params["bn_gamma"]           # [C]
    beta = params["bn_beta"]             # [C]
    mean = params["bn_mean"]             # [C]
    var = params["bn_var"]               # [C]
    head_w = params["head_w"]            # [C, NC]
    head_b = params["head_b"]            # [NC]

    kh, kw, cin, c = conv_w_hwio.shape
    nc = head_w.shape[1]
    stride = 2

    # --- host-side glue: NCHW -> NHWC, SAME padding, im2col [N, K, S] --------
    x = jnp.transpose(img_nchw, (0, 2, 3, 1)).astype(jnp.float32)
    n, h, wd, _ = x.shape
    ho = -(-h // stride)
    wo = -(-wd // stride)
    pad_h = max((ho - 1) * stride + kh - h, 0)
    pad_w = max((wo - 1) * stride + kw - wd, 0)
    xp = jnp.pad(x, ((0, 0),
                     (pad_h // 2, pad_h - pad_h // 2),
                     (pad_w // 2, pad_w - pad_w // 2),
                     (0, 0)))

    k_dim = kh * kw * cin
    s_total = ho * wo
    # TODO(synk): fuse this im2col into the kernel via manual halo DMA of NHWC
    # row bands (memory_space=pl.ANY) to avoid the 2.25x patch HBM round trip.
    cols = []
    for i in range(kh):
        for j in range(kw):
            sl = xp[:,
                    i:i + (ho - 1) * stride + 1:stride,
                    j:j + (wo - 1) * stride + 1:stride, :]     # [N, Ho, Wo, Cin]
            cols.append(jnp.moveaxis(sl, 3, 1).reshape(n, cin, s_total))
    patches_t = jnp.concatenate(cols, axis=1)                  # [N, K, S], K=(ki,kj,cin)

    # Padded sizes: K -> multiple of 16 (bf16 sublanes), C -> lane-dense 128,
    # S -> multiple of the DMA tile (padded columns corrected at finalize).
    kp = _ceil_to(k_dim, 16)
    cp = max(C_PAD, _ceil_to(c, 128))

    if chunk_s is None:
        chunk_s = min(512, _ceil_to(s_total, 128))
    chunk_s = _ceil_to(chunk_s, 128)
    if tile_s is None:
        tile_s = chunk_s * max(1, min(8, _ceil_to(s_total, 128) // chunk_s))
    assert tile_s % chunk_s == 0 and chunk_s % 128 == 0
    nchunks = tile_s // chunk_s
    s_pad = _ceil_to(s_total, tile_s)
    num_s_tiles = s_pad // tile_s

    patches_t = jnp.pad(patches_t, ((0, 0), (0, kp - k_dim), (0, s_pad - s_total)))
    patches_t = patches_t.astype(jnp.bfloat16)                 # [N, Kp, S_pad]

    # Fold BatchNorm into the conv weights / bias on the host.
    bn_scale = gamma * jax.lax.rsqrt(var + BN_EPS)                       # [C]
    conv_w2d = conv_w_hwio.reshape(k_dim, c) * bn_scale[None, :]         # [K, C]
    conv_wT = jnp.pad(conv_w2d, ((0, kp - k_dim), (0, cp - c))).T        # [Cp, Kp]
    conv_wT = conv_wT.astype(jnp.bfloat16)
    conv_b = jnp.pad(beta - mean * bn_scale, (0, cp - c)).reshape(cp, 1)
    conv_b = conv_b.astype(jnp.float32)                                  # [Cp, 1]

    head_w_p = jnp.pad(head_w, ((0, cp - c), (0, 0))).astype(jnp.float32)  # [Cp, NC]
    head_b_p = head_b.reshape(1, nc).astype(jnp.float32)                   # [1, NC]

    kernel = functools.partial(_detector_kernel,
                               chunk_s=chunk_s, nchunks=nchunks,
                               inv_s=1.0 / float(s_total),
                               pad_cols=float(s_pad - s_total))

    cost = pl.CostEstimate(
        flops=2 * n * s_pad * kp * cp + 2 * n * cp * nc,
        transcendentals=n * s_pad * cp,
        bytes_accessed=(patches_t.size * 2 + conv_wT.size * 2
                        + (conv_b.size + head_w_p.size + head_b_p.size
                           + n * nc) * 4))

    logits = pl.pallas_call(
        kernel,
        out_shape=jax.ShapeDtypeStruct((n, 1, nc), jnp.float32),
        grid=(n, num_s_tiles),
        in_specs=[
            # streamed lane-dense patch tiles (double-buffered by the pipeline)
            pl.BlockSpec((None, kp, tile_s), lambda b, s: (b, 0, s)),
            # resident weights (constant index_map -> fetched once)
            pl.BlockSpec((cp, kp), lambda b, s: (0, 0)),
            pl.BlockSpec((cp, 1), lambda b, s: (0, 0)),
            pl.BlockSpec((cp, nc), lambda b, s: (0, 0)),
            pl.BlockSpec((1, nc), lambda b, s: (0, 0)),
        ],
        out_specs=pl.BlockSpec((None, 1, nc), lambda b, s: (b, 0, 0)),
        scratch_shapes=[pltpu.VMEM((cp, 1), jnp.float32)],
        compiler_params=pltpu.CompilerParams(
            dimension_semantics=("parallel", "arbitrary"),
            vmem_limit_bytes=32 * 1024 * 1024),
        cost_estimate=cost,
    )(patches_t, conv_wT, conv_b, head_w_p, head_b_p)
    return logits.reshape(n, nc)


def detector_reference(img_nchw, params):
    """Independent f32 reference using lax.conv, for validation."""
    conv_w = params["conv_w"]
    kh, kw, cin, c = conv_w.shape
    stride = 2
    x = jnp.transpose(img_nchw, (0, 2, 3, 1)).astype(jnp.float32)
    n, h, w, _ = x.shape
    ho = -(-h // stride)
    wo = -(-w // stride)
    pad_h = max((ho - 1) * stride + kh - h, 0)
    pad_w = max((wo - 1) * stride + kw - w, 0)
    feat = jax.lax.conv_general_dilated(
        x, conv_w, window_strides=(stride, stride),
        padding=((pad_h // 2, pad_h - pad_h // 2),
                 (pad_w // 2, pad_w - pad_w // 2)),
        dimension_numbers=("NHWC", "HWIO", "NHWC"))
    inv = jax.lax.rsqrt(params["bn_var"] + BN_EPS)
    feat = (feat - params["bn_mean"]) * inv * params["bn_gamma"] + params["bn_beta"]
    feat = feat * jax.nn.sigmoid(feat)
    pooled = jnp.mean(feat, axis=(1, 2))
    return pooled @ params["head_w"] + params["head_b"]


if __name__ == "__main__":
    # Small, Detector-consistent shapes: batch=2, in_channels=3 (RGB), 36x36,
    # stem channels=32 (padded to 128 lanes in-kernel), num_classes=4.
    N, CIN, H, W = 2, 3, 36, 36
    C_STEM, NUM_CLASSES = 32, 4

    key = jax.random.PRNGKey(0)
    k_img, k_cw, k_g, k_b, k_m, k_v, k_hw, k_hb = jax.random.split(key, 8)

    img = jax.random.normal(k_img, (N, CIN, H, W), dtype=jnp.float32)

    params = {
        "conv_w": 0.1 * jax.random.normal(k_cw, (3, 3, CIN, C_STEM), jnp.float32),
        "bn_gamma": 1.0 + 0.1 * jax.random.normal(k_g, (C_STEM,), jnp.float32),
        "bn_beta": 0.1 * jax.random.normal(k_b, (C_STEM,), jnp.float32),
        "bn_mean": 0.1 * jax.random.normal(k_m, (C_STEM,), jnp.float32),
        "bn_var": jax.random.uniform(k_v, (C_STEM,), jnp.float32, 0.5, 1.5),
        "head_w": 0.1 * jax.random.normal(k_hw, (C_STEM, NUM_CLASSES), jnp.float32),
        "head_b": 0.1 * jax.random.normal(k_hb, (NUM_CLASSES,), jnp.float32),
    }

    ref = jax.block_until_ready(detector_reference(img, params))

    # Default tiling: S=324 -> one 384-lane tile, 60 padded columns corrected
    # at finalize; grid (2, 1) with the batch axis "parallel".
    logits_default = jax.block_until_ready(detector_forward(img, params))

    # Explicit small tiles: 2 spatial DMA tiles x 2 inner chunks per tile,
    # 188 padded columns -> exercises accumulation, chunk loop and correction.
    logits_tiled = jax.block_until_ready(
        detector_forward(img, params, tile_s=256, chunk_s=128))

    # bf16 streamed operands -> tolerance loosened vs the f32 reference.
    np.testing.assert_allclose(np.asarray(logits_default), np.asarray(ref),
                               rtol=2e-2, atol=2e-2)
    np.testing.assert_allclose(np.asarray(logits_tiled), np.asarray(ref),
                               rtol=2e-2, atol=2e-2)

    print("KERNEL_OK")
</pallas_src>

<mosaic_0001>
module attributes {stable_mosaic.version = 11 : i64} {
  func.func @_detector_kernel(%arg0: i32, %arg1: i32, %arg2: memref<1x32x384xbf16, #tpu.memory_space<vmem>>, %arg3: memref<128x32xbf16, #tpu.memory_space<vmem>>, %arg4: memref<128x1xf32, #tpu.memory_space<vmem>>, %arg5: memref<128x4xf32, #tpu.memory_space<vmem>>, %arg6: memref<1x4xf32, #tpu.memory_space<vmem>>, %arg7: memref<1x1x4xf32, #tpu.memory_space<vmem>>, %arg8: memref<128x1xf32, #tpu.memory_space<vmem>>) attributes {dimension_semantics = [#tpu.dimension_semantics<parallel>, #tpu.dimension_semantics<arbitrary>], iteration_bounds = array<i64: 2, 1>, scalar_prefetch = 0 : i64, scratch_operands = 1 : i64, tpu.core_type = #tpu.core_type<tc>, window_params = [{transform_indices = @transform_0, window_bounds = array<i64: 1, 32, 384>}, {pipeline_mode = #tpu.pipeline_mode<synchronous>, transform_indices = @transform_1, window_bounds = array<i64: 128, 32>}, {pipeline_mode = #tpu.pipeline_mode<synchronous>, transform_indices = @transform_2, window_bounds = array<i64: 128, 1>}, {pipeline_mode = #tpu.pipeline_mode<synchronous>, transform_indices = @transform_3, window_bounds = array<i64: 128, 4>}, {pipeline_mode = #tpu.pipeline_mode<synchronous>, transform_indices = @transform_4, window_bounds = array<i64: 1, 4>}, {transform_indices = @transform_5, window_bounds = array<i64: 1, 1, 4>}]} {
    %c0_i32 = arith.constant 0 : i32
    %0 = arith.cmpi eq, %arg1, %c0_i32 : i32
    %1 = arith.extui %0 : i1 to i32
    %c0_i32_0 = arith.constant 0 : i32
    %2 = arith.cmpi ne, %1, %c0_i32_0 : i32
    scf.if %2 {
      %cst_18 = arith.constant 0.000000e+00 : f32
      %31 = vector.broadcast %cst_18 : f32 to vector<128x1xf32>
      %c0_19 = arith.constant 0 : index
      %c0_20 = arith.constant 0 : index
      %32 = vector.load %arg8[%c0_19, %c0_20] : memref<128x1xf32, #tpu.memory_space<vmem>>, vector<128x1xf32>
      tpu.vector_store %arg8[%c0_19, %c0_20], %31 {strides = array<i32>} : memref<128x1xf32, #tpu.memory_space<vmem>>, vector<128x1xf32>,
    } else {
    }
    %c0 = arith.constant 0 : index
    %c0_1 = arith.constant 0 : index
    %3 = vector.load %arg3[%c0, %c0_1] : memref<128x32xbf16, #tpu.memory_space<vmem>>, vector<128x32xbf16>
    %c0_2 = arith.constant 0 : index
    %c0_3 = arith.constant 0 : index
    %4 = vector.load %arg4[%c0_2, %c0_3] : memref<128x1xf32, #tpu.memory_space<vmem>>, vector<128x1xf32>
    %cst = arith.constant 0.000000e+00 : f32
    %5 = vector.broadcast %cst : f32 to vector<128x1xf32>
    %c0_i32_4 = arith.constant 0 : i32
    %c384_i32 = arith.constant 384 : i32
    %6 = arith.muli %c0_i32_4, %c384_i32 : i32
    %7 = tpu.assume_multiple %6, 384 : i32
    %c0_5 = arith.constant 0 : index
    %c0_6 = arith.constant 0 : index
    %8 = arith.index_cast %7 : i32 to index
    %9 = vector.load %arg2[%c0_5, %c0_6, %8] : memref<1x32x384xbf16, #tpu.memory_space<vmem>>, vector<1x32x384xbf16>
    %10 = vector.shape_cast %9 : vector<1x32x384xbf16> to vector<32x384xbf16>
    %cst_7 = arith.constant dense<0.000000e+00> : vector<128x384xf32>
    %11 = tpu.matmul %3, %10, %cst_7 {dimension_numbers = #tpu.dot_dimension_numbers<[1], [0], [0], [1], [0, 0, 1, 1], [], []>} : vector<128x32xbf16>, vector<32x384xbf16>, vector<128x384xf32> -> vector<128x384xf32>
    %12 = vector.broadcast %4 : vector<128x1xf32> to vector<128x384xf32>
    %13 = arith.addf %11, %12 : vector<128x384xf32>
    %cst_8 = arith.constant 5.000000e-01 : f32
    %14 = vector.broadcast %cst_8 : f32 to vector<128x384xf32>
    %15 = arith.mulf %14, %13 : vector<128x384xf32>
    %cst_9 = arith.constant 5.000000e-01 : f32
    %16 = vector.broadcast %cst_9 : f32 to vector<128x384xf32>
    %17 = arith.mulf %16, %13 : vector<128x384xf32>
    %18 = math.tanh %17 : vector<128x384xf32>
    %cst_10 = arith.constant 1.000000e+00 : f32
    %19 = vector.broadcast %cst_10 : f32 to vector<128x384xf32>
    %20 = arith.addf %19, %18 : vector<128x384xf32>
    %21 = arith.mulf %15, %20 : vector<128x384xf32>
    %cst_11 = arith.constant dense<0.000000e+00> : vector<128xf32>
    %22 = vector.multi_reduction <add>, %21, %cst_11 [1] : vector<128x384xf32> to vector<128xf32>
    %23 = vector.shape_cast %22 : vector<128xf32> to vector<128x1xf32>
    %24 = arith.addf %5, %23 : vector<128x1xf32>
    %c1_i32 = arith.constant 1 : i32
    %c0_12 = arith.constant 0 : index
    %c0_13 = arith.constant 0 : index
    %25 = vector.load %arg8[%c0_12, %c0_13] : memref<128x1xf32, #tpu.memory_space<vmem>>, vector<128x1xf32>
    %26 = arith.addf %25, %24 : vector<128x1xf32>
    %c0_14 = arith.constant 0 : index
    %c0_15 = arith.constant 0 : index
    %27 = vector.load %arg8[%c0_14, %c0_15] : memref<128x1xf32, #tpu.memory_space<vmem>>, vector<128x1xf32>
    tpu.vector_store %arg8[%c0_14, %c0_15], %26 {strides = array<i32>} : memref<128x1xf32, #tpu.memory_space<vmem>>, vector<128x1xf32>,
    %c0_i32_16 = arith.constant 0 : i32
    %28 = arith.cmpi eq, %arg1, %c0_i32_16 : i32
    %29 = arith.extui %28 : i1 to i32
    %c0_i32_17 = arith.constant 0 : i32
    %30 = arith.cmpi ne, %29, %c0_i32_17 : i32
    scf.if %30 {
      %c0_18 = arith.constant 0 : index
      %c0_19 = arith.constant 0 : index
      %31 = vector.load %arg8[%c0_18, %c0_19] : memref<128x1xf32, #tpu.memory_space<vmem>>, vector<128x1xf32>
      %cst_20 = arith.constant 5.000000e-01 : f32
      %32 = vector.broadcast %cst_20 : f32 to vector<128x1xf32>
      %33 = arith.mulf %32, %4 : vector<128x1xf32>
      %cst_21 = arith.constant 5.000000e-01 : f32
      %34 = vector.broadcast %cst_21 : f32 to vector<128x1xf32>
      %35 = arith.mulf %34, %4 : vector<128x1xf32>
      %36 = math.tanh %35 : vector<128x1xf32>
      %cst_22 = arith.constant 1.000000e+00 : f32
      %37 = vector.broadcast %cst_22 : f32 to vector<128x1xf32>
      %38 = arith.addf %37, %36 : vector<128x1xf32>
      %39 = arith.mulf %33, %38 : vector<128x1xf32>
      %cst_23 = arith.constant 6.000000e+01 : f32
      %40 = vector.broadcast %cst_23 : f32 to vector<128x1xf32>
      %41 = arith.mulf %40, %39 : vector<128x1xf32>
      %42 = arith.subf %31, %41 : vector<128x1xf32>
      %cst_24 = arith.constant 0.00308641978 : f32
      %43 = vector.broadcast %cst_24 : f32 to vector<128x1xf32>
      %44 = arith.mulf %42, %43 : vector<128x1xf32>
      %c0_25 = arith.constant 0 : index
      %c0_26 = arith.constant 0 : index
      %45 = vector.load %arg5[%c0_25, %c0_26] : memref<128x4xf32, #tpu.memory_space<vmem>>, vector<128x4xf32>
      %46 = vector.broadcast %44 : vector<128x1xf32> to vector<128x4xf32>
      %47 = arith.mulf %45, %46 : vector<128x4xf32>
      %cst_27 = arith.constant dense<0.000000e+00> : vector<4xf32>
      %48 = vector.multi_reduction <add>, %47, %cst_27 [0] : vector<128x4xf32> to vector<4xf32>
      %49 = vector.shape_cast %48 : vector<4xf32> to vector<1x4xf32>
      %c0_28 = arith.constant 0 : index
      %c0_29 = arith.constant 0 : index
      %50 = vector.load %arg6[%c0_28, %c0_29] : memref<1x4xf32, #tpu.memory_space<vmem>>, vector<1x4xf32>
      %51 = arith.addf %49, %50 : vector<1x4xf32>
      %c0_30 = arith.constant 0 : index
      %c0_31 = arith.constant 0 : index
      %c0_32 = arith.constant 0 : index
      %52 = vector.load %arg7[%c0_30, %c0_31, %c0_32] : memref<1x1x4xf32, #tpu.memory_space<vmem>>, vector<1x1x4xf32>
      %53 = vector.shape_cast %52 : vector<1x1x4xf32> to vector<1x4xf32>
      %54 = vector.shape_cast %51 : vector<1x4xf32> to vector<1x1x4xf32>
      tpu.vector_store %arg7[%c0_30, %c0_31, %c0_32], %54 {strides = array<i32>} : memref<1x1x4xf32, #tpu.memory_space<vmem>>, vector<1x1x4xf32>,
    } else {
    }
    return
  }
  func.func @transform_0(%arg0: i32, %arg1: i32) -> (i32, i32, i32) {
    %c0_i32 = arith.constant 0 : i32
    %c0_i32_0 = arith.constant 0 : i32
    return %arg0, %c0_i32, %arg1 : i32, i32, i32
  }
  func.func @transform_1(%arg0: i32, %arg1: i32) -> (i32, i32) {
    %c0_i32 = arith.constant 0 : i32
    %c0_i32_0 = arith.constant 0 : i32
    %c0_i32_1 = arith.constant 0 : i32
    return %c0_i32, %c0_i32_0 : i32, i32
  }
  func.func @transform_2(%arg0: i32, %arg1: i32) -> (i32, i32) {
    %c0_i32 = arith.constant 0 : i32
    %c0_i32_0 = arith.constant 0 : i32
    %c0_i32_1 = arith.constant 0 : i32
    return %c0_i32, %c0_i32_0 : i32, i32
  }
  func.func @transform_3(%arg0: i32, %arg1: i32) -> (i32, i32) {
    %c0_i32 = arith.constant 0 : i32
    %c0_i32_0 = arith.constant 0 : i32
    %c0_i32_1 = arith.constant 0 : i32
    return %c0_i32, %c0_i32_0 : i32, i32
  }
  func.func @transform_4(%arg0: i32, %arg1: i32) -> (i32, i32) {
    %c0_i32 = arith.constant 0 : i32
    %c0_i32_0 = arith.constant 0 : i32
    %c0_i32_1 = arith.constant 0 : i32
    return %c0_i32, %c0_i32_0 : i32, i32
  }
  func.func @transform_5(%arg0: i32, %arg1: i32) -> (i32, i32, i32) {
    %c0_i32 = arith.constant 0 : i32
    %c0_i32_0 = arith.constant 0 : i32
    %c0_i32_1 = arith.constant 0 : i32
    return %arg0, %c0_i32, %c0_i32_0 : i32, i32, i32
  }
}

</mosaic_0001>

<llo_original>
// kernel: tpu_custom_call.1
$region0: #{tpu_custom_call.1}
  #allocation0 [shape = 'u32[]', space=smem, size = 0x4, offset = 0x4, fixed_abs, tag = 'smem constant byte address 0x4 - core index']
  #allocation1 [shape = 'u32[144,128]{1,0:T(1,128)}', space=vmem, size = 0x12000, scoped, tag = 'internal scratch']
  #allocation2 [shape = 'f32[128,1]{1,0:T(8,128)}', space=vmem, size = 0x10000, scoped, tag = 'scratch operand']
  %s0 = inlined_call_operand.vmem [shape: bf16[2,32,384], index: 0, kind: input, shape index: {}]
  %s1 = inlined_call_operand.vmem [shape: bf16[128,32], index: 1, kind: input, shape index: {}]
  %s2 = inlined_call_operand.vmem [shape: f32[128,1], index: 2, kind: input, shape index: {}]
  %s3 = inlined_call_operand.vmem [shape: f32[128,4], index: 3, kind: input, shape index: {}]
  %s4 = inlined_call_operand.vmem [shape: f32[1,4], index: 4, kind: input, shape index: {}]
  %s5 = inlined_call_operand.hbm [shape: f32[2,1,4], index: 5, kind: output, shape index: {}]
  %s6 = sld [smem:[#allocation0]]
  $region61: #{tpu_custom_call.1} parent=0
    _
  %s8 = ssub.s32 1, %s6
  %s9 = scalar_select 0, %s8, %s6
  $region1: #{tpu_custom_call.1} parent=0
    #allocation3 [shape = 'u8[1024]{0}', space=vmem, size = 0x400, scoped, tag = 'output window, operand 0']
    #allocation4 [shape = 's32[2]{0}', space=sflag, size = 0x8, scoped, tag = 'scoped memory for tpu_custom_call.1']
    %10 = vsyncpa [#allocation4], 0
    %s11 = scalar_lea.sflag [#allocation4], 1
    %12 = vsyncpa %s11, 0
    loop: start=0, step=1, limit=4
    $region2: #{tpu_custom_call.1} parent=1 // loop_pre_header
      _
    $region3: #{tpu_custom_call.1} parent=1 // loop_header
      %s14 = sphi 0, %s18
      %p15 = scmp.ge.s32.totalorder %s14, 4
      %s21 = sphi 0, %s33
      %s22 = sphi 0, %s29
      %s23 = sphi 0, %s21
      %s24 = sphi 0, %s22
      %s25 = sphi 0, %s23
      %s26 = sphi 0, %s24
      %s38 = sphi 0, %s40
      %s41 = sphi 0, %s38
      %s42 = sphi 0, %s41
      %s58 = sphi 0, %s42
      %s62 = sphi 0, %s62
      %s64 = sphi 0, %s62
      %s65 = sphi 0, %s64
      %s79 = sphi 0, %s65
      %s83 = sphi 0, %s83
      %s85 = sphi 0, %s83
      %s86 = sphi 0, %s85
      %s100 = sphi 0, %s86
      %s104 = sphi 0, %s104
      %s106 = sphi 0, %s104
      %s107 = sphi 0, %s106
      %s121 = sphi 0, %s107
      %s125 = sphi 0, %s125
      %s127 = sphi 0, %s125
      %s128 = sphi 0, %s127
      %s142 = sphi 0, %s128
      %s148 = sphi 0, %s150
      %s151 = sphi 0, %s148
      %s152 = sphi 0, %s151
      %s168 = sphi 0, %s152
    $region4: #{tpu_custom_call.1} parent=1 // loop_header_branch
      %17 = sbr.rel (%p15) target = $region8
    $region5: #{tpu_custom_call.1} parent=1 // loop_body
      %s19 = ssub.s32 %s14, 1
      %s20 = ssub.s32 %s14, 2
      %s27 = sadd.s32 1, %s22
      %p28 = scmp.ge.s32.totalorder %s27, 1
      %s29 = scalar_select %p28, 0, %s27
      %s30 = sadd.s32 1, %s21
      %s31 = scalar_select %p28, %s30, %s21
      %p32 = scmp.ge.s32.totalorder %s31, 2
      %s33 = scalar_select %p32, 0, %s31
      %s34 = ssub.s32 %s21, %s33
      %s35 = ssub.s32 %s22, %s29
      %s36 = sor.u32 %s34, %s35
      %p37 = scmp.eq.s32.totalorder %s36, 0
      %s39 = sadd.s32 %s38, 1
      %s40 = scalar_select %p37, %s38, %s39
      %p43 = pneg %p37
      %p44 = scmp.eq.s32.totalorder %s14, 1
      %p45 = por %p43, %p44
      %p46 = scmp.ne.s32.totalorder %s38, %s41
      %p47 = scmp.eq.s32.totalorder %s14, 0
      %p48 = por %p46, %p47
      %p49 = scmp.ne.s32.totalorder %s38, %s41
      %p50 = scmp.eq.s32.totalorder %s19, 1
      %p51 = por %p49, %p50
      %p52 = scmp.ne.s32.totalorder %s41, %s42
      %p53 = scmp.eq.s32.totalorder %s19, 0
      %p54 = por %p52, %p53
      %p55 = scmp.ne.s32.totalorder %s41, %s42
      %p56 = scmp.eq.s32.totalorder %s20, 1
      %p57 = por %p55, %p56
      %p59 = scmp.ne.s32.totalorder %s42, %s58
      %p60 = scmp.eq.s32.totalorder %s20, 0
      %p61 = por %p59, %p60
      %s63 = sadd.s32 %s62, 1
      %p66 = scmp.eq.s32.totalorder %s14, 1
      %p67 = scmp.ne.s32.totalorder %s62, %s64
      %p68 = scmp.eq.s32.totalorder %s14, 0
      %p69 = por %p67, %p68
      %p70 = scmp.ne.s32.totalorder %s62, %s64
      %p71 = scmp.eq.s32.totalorder %s19, 1
      %p72 = por %p70, %p71
      %p73 = scmp.ne.s32.totalorder %s64, %s65
      %p74 = scmp.eq.s32.totalorder %s19, 0
      %p75 = por %p73, %p74
      %p76 = scmp.ne.s32.totalorder %s64, %s65
      %p77 = scmp.eq.s32.totalorder %s20, 1
      %p78 = por %p76, %p77
      %p80 = scmp.ne.s32.totalorder %s65, %s79
      %p81 = scmp.eq.s32.totalorder %s20, 0
      %p82 = por %p80, %p81
      %s84 = sadd.s32 %s83, 1
      %p87 = scmp.eq.s32.totalorder %s14, 1
      %p88 = scmp.ne.s32.totalorder %s83, %s85
      %p89 = scmp.eq.s32.totalorder %s14, 0
      %p90 = por %p88, %p89
      %p91 = scmp.ne.s32.totalorder %s83, %s85
      %p92 = scmp.eq.s32.totalorder %s19, 1
      %p93 = por %p91, %p92
      %p94 = scmp.ne.s32.totalorder %s85, %s86
      %p95 = scmp.eq.s32.totalorder %s19, 0
      %p96 = por %p94, %p95
      %p97 = scmp.ne.s32.totalorder %s85, %s86
      %p98 = scmp.eq.s32.totalorder %s20, 1
      %p99 = por %p97, %p98
      %p101 = scmp.ne.s32.totalorder %s86, %s100
      %p102 = scmp.eq.s32.totalorder %s20, 0
      %p103 = por %p101, %p102
      %s105 = sadd.s32 %s104, 1
      %p108 = scmp.eq.s32.totalorder %s14, 1
      %p109 = scmp.ne.s32.totalorder %s104, %s106
      %p110 = scmp.eq.s32.totalorder %s14, 0
      %p111 = por %p109, %p110
      %p112 = scmp.ne.s32.totalorder %s104, %s106
      %p113 = scmp.eq.s32.totalorder %s19, 1
      %p114 = por %p112, %p113
      %p115 = scmp.ne.s32.totalorder %s106, %s107
      %p116 = scmp.eq.s32.totalorder %s19, 0
      %p117 = por %p115, %p116
      %p118 = scmp.ne.s32.totalorder %s106, %s107
      %p119 = scmp.eq.s32.totalorder %s20, 1
      %p120 = por %p118, %p119
      %p122 = scmp.ne.s32.totalorder %s107, %s121
      %p123 = scmp.eq.s32.totalorder %s20, 0
      %p124 = por %p122, %p123
      %s126 = sadd.s32 %s125, 1
      %p129 = scmp.eq.s32.totalorder %s14, 1
      %p130 = scmp.ne.s32.totalorder %s125, %s127
      %p131 = scmp.eq.s32.totalorder %s14, 0
      %p132 = por %p130, %p131
      %p133 = scmp.ne.s32.totalorder %s125, %s127
      %p134 = scmp.eq.s32.totalorder %s19, 1
      %p135 = por %p133, %p134
      %p136 = scmp.ne.s32.totalorder %s127, %s128
      %p137 = scmp.eq.s32.totalorder %s19, 0
      %p138 = por %p136, %p137
      %p139 = scmp.ne.s32.totalorder %s127, %s128
      %p140 = scmp.eq.s32.totalorder %s20, 1
      %p141 = por %p139, %p140
      %p143 = scmp.ne.s32.totalorder %s128, %s142
      %p144 = scmp.eq.s32.totalorder %s20, 0
      %p145 = por %p143, %p144
      %s146 = ssub.s32 %s21, %s33
      %p147 = scmp.eq.s32.totalorder %s146, 0
      %s149 = sadd.s32 %s148, 1
      %s150 = scalar_select %p147, %s148, %s149
      %p153 = pneg %p147
      %p154 = scmp.eq.s32.totalorder %s14, 1
      %p155 = por %p153, %p154
      %p156 = scmp.ne.s32.totalorder %s148, %s151
      %p157 = scmp.eq.s32.totalorder %s14, 0
      %p158 = por %p156, %p157
      %p159 = scmp.ne.s32.totalorder %s148, %s151
      %p160 = scmp.eq.s32.totalorder %s19, 1
      %p161 = por %p159, %p160
      %p162 = scmp.ne.s32.totalorder %s151, %s152
      %p163 = scmp.eq.s32.totalorder %s19, 0
      %p164 = por %p162, %p163
      %p165 = scmp.ne.s32.totalorder %s151, %s152
      %p166 = scmp.eq.s32.totalorder %s20, 1
      %p167 = por %p165, %p166
      %p169 = scmp.ne.s32.totalorder %s152, %s168
      %p170 = scmp.eq.s32.totalorder %s20, 0
      %p171 = por %p169, %p170
      %p172 = scmp.le.s32.totalorder 1, %s14
      %p173 = scmp.lt.s32.totalorder %s14, 3
      %p174 = pnand %p172, %p173
      %p175 = pneg %p174
      // Predicated region
      $region9: #{tpu_custom_call.1} parent=5 // pred_check
        _
      $region10: #{tpu_custom_call.1} parent=5 // pred_check_branch
        %177 = sbr.rel (%p174) target = $region12
      $region11: #{tpu_custom_call.1} parent=5 // pred_region
        %s178 = ssub.s32 %s14, 1
        // Predicated region
        $region13: #{tpu_custom_call.1} parent=11 // pred_check
          %p179 = pneg %p75
        $region14: #{tpu_custom_call.1} parent=11 // pred_check_branch
          %181 = sbr.rel (%p179) target = $region16
        $region15: #{tpu_custom_call.1} parent=11 // pred_region
          _
        $region16: #{tpu_custom_call.1} parent=11 // pred_fallthru
          _
        // Predicated region
        $region17: #{tpu_custom_call.1} parent=11 // pred_check
          %p182 = pneg %p96
        $region18: #{tpu_custom_call.1} parent=11 // pred_check_branch
          %184 = sbr.rel (%p182) target = $region20
        $region19: #{tpu_custom_call.1} parent=11 // pred_region
          _
        $region20: #{tpu_custom_call.1} parent=11 // pred_fallthru
          _
        // Predicated region
        $region21: #{tpu_custom_call.1} parent=11 // pred_check
          %p185 = pneg %p117
        $region22: #{tpu_custom_call.1} parent=11 // pred_check_branch
          %187 = sbr.rel (%p185) target = $region24
        $region23: #{tpu_custom_call.1} parent=11 // pred_region
          _
        $region24: #{tpu_custom_call.1} parent=11 // pred_fallthru
          _
        // Predicated region
        $region25: #{tpu_custom_call.1} parent=11 // pred_check
          %p188 = pneg %p138
        $region26: #{tpu_custom_call.1} parent=11 // pred_check_branch
          %190 = sbr.rel (%p188) target = $region28
        $region27: #{tpu_custom_call.1} parent=11 // pred_region
          _
        $region28: #{tpu_custom_call.1} parent=11 // pred_fallthru
          _
      $region12: #{tpu_custom_call.1} parent=5 // pred_fallthru
        _
      %p191 = scmp.lt.s32.totalorder %s14, 2
      // Predicated region
      $region29: #{tpu_custom_call.1} parent=5 // pred_check
        %p192 = pneg %p191
      $region30: #{tpu_custom_call.1} parent=5 // pred_check_branch
        %194 = sbr.rel (%p192) target = $region32
      $region31: #{tpu_custom_call.1} parent=5 // pred_region
        // Predicated region
        $region33: #{tpu_custom_call.1} parent=31 // pred_check
          %p195 = pneg %p48
        $region34: #{tpu_custom_call.1} parent=31 // pred_check_branch
          %197 = sbr.rel (%p195) target = $region36
        $region35: #{tpu_custom_call.1} parent=31 // pred_region
          %s198 = smul.u32 3, %s22
          %p199 = scmp.lt.s32.totalorder %s21, 1
          %s200 = scalar_select %p199, %s21, 1
          %p201 = scmp.lt.s32.totalorder %s198, 2
          %s202 = scalar_select %p201, %s198, 2
          %s203 = smul.addr %s200, 12
          %s204 = sadd.s32 %s202, %s203
          %s205 = smul.addr %s204, 4
          %s206 = scalar_lea.vmem %s0, %s205
          %s207 = smul.u32 3, %s22
        $region36: #{tpu_custom_call.1} parent=31 // pred_fallthru
          _
      $region32: #{tpu_custom_call.1} parent=5 // pred_fallthru
        _
      %p208 = scmp.le.s32.totalorder 1, %s14
      %p209 = scmp.lt.s32.totalorder %s14, 3
      %p210 = pnand %p208, %p209
      %p211 = pneg %p210
      // Predicated region
      $region37: #{tpu_custom_call.1} parent=5 // pred_check
        _
      $region38: #{tpu_custom_call.1} parent=5 // pred_check_branch
        %213 = sbr.rel (%p210) target = $region40
      $region39: #{tpu_custom_call.1} parent=5 // pred_region
        %s214 = ssub.s32 %s14, 1
        %s215 = smul.u32 3, %s24
        %p216 = scmp.lt.s32.totalorder %s23, 1
        %s217 = scalar_select %p216, %s23, 1
        %p218 = scmp.lt.s32.totalorder %s215, 2
        %s219 = scalar_select %p218, %s215, 2
        %s220 = smul.addr %s217, 12
        %s221 = sadd.s32 %s219, %s220
        %s222 = smul.addr %s221, 4
        %s223 = scalar_lea.vmem %s0, %s222
        %p224 = pneg %p54
        %p225 = pneg %p51
        %p226 = pneg %p75
        %p227 = pneg %p72
        %p228 = pneg %p96
        %p229 = pneg %p93
        %p230 = pneg %p117
        %p231 = pneg %p114
        %p232 = pneg %p138
        %p233 = pneg %p135
        %p234 = pneg %p164
        %p235 = pneg %p161
        %s236 = sand.u32 %s151, 1
        %s237 = scalar_lea.sflag [#allocation4], %s236
        %s238 = sand.u32 %s151, 1
        %s239 = scalar_lea.vmem [#allocation3], %s238
        %s240 = smul.u32 3, %s24
        %p241 = scmp.lt.s32.totalorder %s23, 1
        %s242 = scalar_select %p241, %s23, 1
        %p243 = scmp.lt.s32.totalorder %s240, 2
        %s244 = scalar_select %p243, %s240, 2
        %s245 = smul.addr %s242, 12
        %s246 = sadd.s32 %s244, %s245
        %s247 = smul.addr %s246, 4
        %s248 = scalar_lea.vmem %s0, %s247
        %s249 = smul.u32 3, %s24
        %p251 = scmp.eq.s32.totalorder %s24, 0
        // Predicated region
        $region41: #{tpu_custom_call.1} parent=39 // pred_check
          %p252 = pneg %p251
        $region42: #{tpu_custom_call.1} parent=39 // pred_check_branch
          %254 = sbr.rel (%p252) target = $region44
        $region43: #{tpu_custom_call.1} parent=39 // pred_region
          %vm255 = vcmask 7168
          %256 = vst.msk [vmem:[#allocation2] sm:$0xff] %vm255, 0.0
          %257 = vst.msk [vmem:[#allocation2 + $0x8] sm:$0xff] %vm255, 0.0
          %258 = vst.msk [vmem:[#allocation2 + $0x10] sm:$0xff] %vm255, 0.0
          %259 = vst.msk [vmem:[#allocation2 + $0x18] sm:$0xff] %vm255, 0.0
          %260 = vst.msk [vmem:[#allocation2 + $0x20] sm:$0xff] %vm255, 0.0
          %261 = vst.msk [vmem:[#allocation2 + $0x28] sm:$0xff] %vm255, 0.0
          %262 = vst.msk [vmem:[#allocation2 + $0x30] sm:$0xff] %vm255, 0.0
          %263 = vst.msk [vmem:[#allocation2 + $0x38] sm:$0xff] %vm255, 0.0
          %264 = vst.msk [vmem:[#allocation2 + $0x40] sm:$0xff] %vm255, 0.0
          %265 = vst.msk [vmem:[#allocation2 + $0x48] sm:$0xff] %vm255, 0.0
          %266 = vst.msk [vmem:[#allocation2 + $0x50] sm:$0xff] %vm255, 0.0
          %267 = vst.msk [vmem:[#allocation2 + $0x58] sm:$0xff] %vm255, 0.0
          %268 = vst.msk [vmem:[#allocation2 + $0x60] sm:$0xff] %vm255, 0.0
          %269 = vst.msk [vmem:[#allocation2 + $0x68] sm:$0xff] %vm255, 0.0
          %270 = vst.msk [vmem:[#allocation2 + $0x70] sm:$0xff] %vm255, 0.0
          %271 = vst.msk [vmem:[#allocation2 + $0x78] sm:$0xff] %vm255, 0.0
        $region44: #{tpu_custom_call.1} parent=39 // pred_fallthru
          _
        %v272 = vld [vmem:[%s1] sm:$0xf]
        %v273 = vld [vmem:[%s1 + $0x4] sm:$0xf]
        %v274 = vld [vmem:[%s1 + $0x8] sm:$0xf]
        %v275 = vld [vmem:[%s1 + $0xc] sm:$0xf]
        %v276 = vld [vmem:[%s1 + $0x10] sm:$0xf]
        %v277 = vld [vmem:[%s1 + $0x14] sm:$0xf]
        %v278 = vld [vmem:[%s1 + $0x18] sm:$0xf]
        %v279 = vld [vmem:[%s1 + $0x1c] sm:$0xf]
        %v280 = vld [vmem:[%s1 + $0x20] sm:$0xf]
        %v281 = vld [vmem:[%s1 + $0x24] sm:$0xf]
        %v282 = vld [vmem:[%s1 + $0x28] sm:$0xf]
        %v283 = vld [vmem:[%s1 + $0x2c] sm:$0xf]
        %v284 = vld [vmem:[%s1 + $0x30] sm:$0xf]
        %v285 = vld [vmem:[%s1 + $0x34] sm:$0xf]
        %v286 = vld [vmem:[%s1 + $0x38] sm:$0xf]
        %v287 = vld [vmem:[%s1 + $0x3c] sm:$0xf]
        %v288 = vld [vmem:[%s2] sm:$0xff]
        %v289 = vld [vmem:[%s2 + $0x8] sm:$0xff]
        %v290 = vld [vmem:[%s2 + $0x10] sm:$0xff]
        %v291 = vld [vmem:[%s2 + $0x18] sm:$0xff]
        %v292 = vld [vmem:[%s2 + $0x20] sm:$0xff]
        %v293 = vld [vmem:[%s2 + $0x28] sm:$0xff]
        %v294 = vld [vmem:[%s2 + $0x30] sm:$0xff]
        %v295 = vld [vmem:[%s2 + $0x38] sm:$0xff]
        %v296 = vld [vmem:[%s2 + $0x40] sm:$0xff]
        %v297 = vld [vmem:[%s2 + $0x48] sm:$0xff]
        %v298 = vld [vmem:[%s2 + $0x50] sm:$0xff]
        %v299 = vld [vmem:[%s2 + $0x58] sm:$0xff]
        %v300 = vld [vmem:[%s2 + $0x60] sm:$0xff]
        %v301 = vld [vmem:[%s2 + $0x68] sm:$0xff]
        %v302 = vld [vmem:[%s2 + $0x70] sm:$0xff]
        %v303 = vld [vmem:[%s2 + $0x78] sm:$0xff]
        %v304 = vld [vmem:[%s248] sm:$0xff]
        %v305 = vld [vmem:[%s248 + $0x8] sm:$0xf]
        %v306 = vld [vmem:[%s248 + $0xc] sm:$0xff]
        %v307 = vld [vmem:[%s248 + $0x14] sm:$0xf]
        %v308 = vld [vmem:[%s248 + $0x18] sm:$0xff]
        %v309 = vld [vmem:[%s248 + $0x20] sm:$0xf]
        %v310 = vld [vmem:[%s248 + $0x24] sm:$0xff]
        %v311 = vld [vmem:[%s248 + $0x2c] sm:$0xf]
        %313 = vset.pattern.permute.xlu0 0
        %314 = vperm.xlu0 %313, %v288
        %v315 = vpop.permute.xlu0 %314
        %318 = vset.pattern.permute.xlu0 0
        %319 = vperm.xlu0 %318, %v289
        %v320 = vpop.permute.xlu0 %319
        %323 = vset.pattern.permute.xlu0 0
        %324 = vperm.xlu0 %323, %v290
        %v325 = vpop.permute.xlu0 %324
        %328 = vset.pattern.permute.xlu0 0
        %329 = vperm.xlu0 %328, %v291
        %v330 = vpop.permute.xlu0 %329
        %333 = vset.pattern.permute.xlu0 0
        %334 = vperm.xlu0 %333, %v292
        %v335 = vpop.permute.xlu0 %334
        %338 = vset.pattern.permute.xlu0 0
        %339 = vperm.xlu0 %338, %v293
        %v340 = vpop.permute.xlu0 %339
        %343 = vset.pattern.permute.xlu0 0
        %344 = vperm.xlu0 %343, %v294
        %v345 = vpop.permute.xlu0 %344
        %348 = vset.pattern.permute.xlu0 0
        %349 = vperm.xlu0 %348, %v295
        %v350 = vpop.permute.xlu0 %349
        %353 = vset.pattern.permute.xlu0 0
        %354 = vperm.xlu0 %353, %v296
        %v355 = vpop.permute.xlu0 %354
        %358 = vset.pattern.permute.xlu0 0
        %359 = vperm.xlu0 %358, %v297
        %v360 = vpop.permute.xlu0 %359
        %363 = vset.pattern.permute.xlu0 0
        %364 = vperm.xlu0 %363, %v298
        %v365 = vpop.permute.xlu0 %364
        %368 = vset.pattern.permute.xlu0 0
        %369 = vperm.xlu0 %368, %v299
        %v370 = vpop.permute.xlu0 %369
        %373 = vset.pattern.permute.xlu0 0
        %374 = vperm.xlu0 %373, %v300
        %v375 = vpop.permute.xlu0 %374
        %378 = vset.pattern.permute.xlu0 0
        %379 = vperm.xlu0 %378, %v301
        %v380 = vpop.permute.xlu0 %379
        %383 = vset.pattern.permute.xlu0 0
        %384 = vperm.xlu0 %383, %v302
        %v385 = vpop.permute.xlu0 %384
        %388 = vset.pattern.permute.xlu0 0
        %389 = vperm.xlu0 %388, %v303
        %v390 = vpop.permute.xlu0 %389
        %v408 = vunpack.c.l.b16 %v272
        %v409 = vunpack.c.l.b16 %v273
        %v410 = vunpack.c.l.b16 %v274
        %v411 = vunpack.c.l.b16 %v275
        %v412 = vunpack.c.l.b16 %v276
        %v413 = vunpack.c.l.b16 %v277
        %v414 = vunpack.c.l.b16 %v278
        %v415 = vunpack.c.l.b16 %v279
        %v416 = vunpack.c.l.b16 %v280
        %v417 = vunpack.c.l.b16 %v281
        %v418 = vunpack.c.l.b16 %v282
        %v419 = vunpack.c.l.b16 %v283
        %v420 = vunpack.c.l.b16 %v284
        %v421 = vunpack.c.l.b16 %v285
        %v422 = vunpack.c.l.b16 %v286
        %v423 = vunpack.c.l.b16 %v287
        %v424 = vpack.c.b16 %v409, %v408
        %v425 = vpack.c.b16 %v411, %v410
        %v426 = vpack.c.b16 %v413, %v412
        %v427 = vpack.c.b16 %v415, %v414
        %v428 = vpack.c.b16 %v417, %v416
        %v429 = vpack.c.b16 %v419, %v418
        %v430 = vpack.c.b16 %v421, %v420
        %v431 = vpack.c.b16 %v423, %v422
        %v440 = vunpack.c.l.b16 %v304
        %v441 = vunpack.c.h.b16 %v304
        %v442 = vunpack.c.l.b16 %v305
        %v443 = vunpack.c.l.b16 %v306
        %v444 = vunpack.c.h.b16 %v306
        %v445 = vunpack.c.l.b16 %v307
        %v446 = vunpack.c.l.b16 %v308
        %v447 = vunpack.c.h.b16 %v308
        %v448 = vunpack.c.l.b16 %v309
        %v449 = vunpack.c.l.b16 %v310
        %v450 = vunpack.c.h.b16 %v310
        %v451 = vunpack.c.l.b16 %v311
        %v452 = vpack.c.b16 %v443, %v440
        %v453 = vpack.c.b16 %v444, %v441
        %v454 = vpack.c.b16 %v445, %v442
        %v455 = vpack.c.b16 %v449, %v446
        %v456 = vpack.c.b16 %v450, %v447
        %v457 = vpack.c.b16 %v451, %v448
        %vm464 = vcmask 261120
        %v466 = vsel %vm464, %v424, 0
        %v469 = vsel %vm464, %v425, 0
        %v472 = vsel %vm464, %v426, 0
        %v475 = vsel %vm464, %v427, 0
        %v478 = vsel %vm464, %v428, 0
        %v481 = vsel %vm464, %v429, 0
        %v484 = vsel %vm464, %v430, 0
        %v487 = vsel %vm464, %v431, 0
        %489 = vmatprep.subr.bf16.mxu0 0
        %490 = vmatpush1.bf16.msra.mxu0 0
        %491 = vmatprep.subr.bf16.mxu0 0
        %492 = vmatpush1.bf16.msra.mxu0 0
        %493 = vmatprep.subr.bf16.mxu0 0
        %494 = vmatpush1.bf16.msra.mxu0 0
        %495 = vmatprep.subr.bf16.mxu0 0
        %496 = vmatpush1.bf16.msra.mxu0 0
        %497 = vmatprep.subr.bf16.mxu0 0
        %498 = vmatpush1.bf16.msra.mxu0 0
        %499 = vmatprep.subr.bf16.mxu0 0
        %500 = vmatpush1.bf16.msra.mxu0 0
        %501 = vmatprep.subr.bf16.mxu0 %v456
        %502 = vmatpush1.bf16.msra.mxu0 %v455
        %503 = vmatprep.subr.bf16.mxu0 %v453
        %504 = vmatpush1.bf16.msra.mxu0 %v452
        %505 = vmatprep.subr.bf16.mxu0 0
        %506 = vmatpush2.bf16.msra.mxu0 0
        %507 = vmatprep.subr.bf16.mxu0 0
        %508 = vmatpush2.bf16.msra.mxu0 0
        %509 = vmatprep.subr.bf16.mxu0 0
        %510 = vmatpush2.bf16.msra.mxu0 0
        %511 = vmatprep.subr.bf16.mxu0 0
        %512 = vmatpush2.bf16.msra.mxu0 0
        %513 = vmatprep.subr.bf16.mxu0 0
        %514 = vmatpush2.bf16.msra.mxu0 0
        %515 = vmatprep.subr.bf16.mxu0 0
        %516 = vmatpush2.bf16.msra.mxu0 0
        %517 = vmatprep.subr.bf16.mxu0 0
        %518 = vmatpush2.bf16.msra.mxu0 0
        %519 = vmatprep.subr.bf16.mxu0 0
        %520 = vmatpush2.bf16.msra.mxu0 0
        %521 = vmatprep.mubr.bf16.mxu0 0
        %522 = vmatmul.mubr.bf16.gmra.mxu0 %v466
        %v523 = vpop.f32.mrf.mxu0
        %v524 = vadd.f32 %v315, %v523
        %v525 = vpop.f32.mrf.mxu0
        %v526 = vadd.f32 %v315, %v525
        %v527 = vpop.f32.mrf.mxu0
        %v528 = vadd.f32 %v320, %v527
        %v529 = vpop.f32.mrf.mxu0
        %v530 = vadd.f32 %v320, %v529
        %531 = vmatprep.mubr.bf16.mxu0 0
        %532 = vmatmul.mubr.bf16.gmra.mxu0 %v469
        %v533 = vpop.f32.mrf.mxu0
        %v534 = vadd.f32 %v325, %v533
        %v535 = vpop.f32.mrf.mxu0
        %v536 = vadd.f32 %v325, %v535
        %v537 = vpop.f32.mrf.mxu0
        %v538 = vadd.f32 %v330, %v537
        %v539 = vpop.f32.mrf.mxu0
        %v540 = vadd.f32 %v330, %v539
        %541 = vmatprep.mubr.bf16.mxu0 0
        %542 = vmatmul.mubr.bf16.gmra.mxu0 %v472
        %v543 = vpop.f32.mrf.mxu0
        %v544 = vadd.f32 %v335, %v543
        %v545 = vpop.f32.mrf.mxu0
        %v546 = vadd.f32 %v335, %v545
        %v547 = vpop.f32.mrf.mxu0
        %v548 = vadd.f32 %v340, %v547
        %v549 = vpop.f32.mrf.mxu0
        %v550 = vadd.f32 %v340, %v549
        %551 = vmatprep.mubr.bf16.mxu0 0
        %552 = vmatmul.mubr.bf16.gmra.mxu0 %v475
        %v553 = vpop.f32.mrf.mxu0
        %v554 = vadd.f32 %v345, %v553
        %v555 = vpop.f32.mrf.mxu0
        %v556 = vadd.f32 %v345, %v555
        %v557 = vpop.f32.mrf.mxu0
        %v558 = vadd.f32 %v350, %v557
        %v559 = vpop.f32.mrf.mxu0
        %v560 = vadd.f32 %v350, %v559
        %561 = vmatprep.mubr.bf16.mxu0 0
        %562 = vmatmul.mubr.bf16.gmra.mxu0 %v478
        %v563 = vpop.f32.mrf.mxu0
        %v564 = vadd.f32 %v355, %v563
        %v565 = vpop.f32.mrf.mxu0
        %v566 = vadd.f32 %v355, %v565
        %v567 = vpop.f32.mrf.mxu0
        %v568 = vadd.f32 %v360, %v567
        %v569 = vpop.f32.mrf.mxu0
        %v570 = vadd.f32 %v360, %v569
        %571 = vmatprep.mubr.bf16.mxu0 0
        %572 = vmatmul.mubr.bf16.gmra.mxu0 %v481
        %v573 = vpop.f32.mrf.mxu0
        %v574 = vadd.f32 %v365, %v573
        %v575 = vpop.f32.mrf.mxu0
        %v576 = vadd.f32 %v365, %v575
        %v577 = vpop.f32.mrf.mxu0
        %v578 = vadd.f32 %v370, %v577
        %v579 = vpop.f32.mrf.mxu0
        %v580 = vadd.f32 %v370, %v579
        %581 = vmatprep.mubr.bf16.mxu0 0
        %582 = vmatmul.mubr.bf16.gmra.mxu0 %v484
        %v583 = vpop.f32.mrf.mxu0
        %v584 = vadd.f32 %v375, %v583
        %v585 = vpop.f32.mrf.mxu0
        %v586 = vadd.f32 %v375, %v585
        %v587 = vpop.f32.mrf.mxu0
        %v588 = vadd.f32 %v380, %v587
        %v589 = vpop.f32.mrf.mxu0
        %v590 = vadd.f32 %v380, %v589
        %591 = vmatprep.mubr.bf16.mxu0 0
        %592 = vmatmul.mubr.bf16.gmra.mxu0 %v487
        %v593 = vpop.f32.mrf.mxu0
        %v594 = vadd.f32 %v385, %v593
        %v595 = vpop.f32.mrf.mxu0
        %v596 = vadd.f32 %v385, %v595
        %v597 = vpop.f32.mrf.mxu0
        %v598 = vadd.f32 %v390, %v597
        %v599 = vpop.f32.mrf.mxu0
        %v600 = vadd.f32 %v390, %v599
        %601 = vdwg.mxu0
        %602 = vmatprep.subr.bf16.mxu0 0
        %603 = vmatpush1.bf16.msra.mxu0 0
        %604 = vmatprep.subr.bf16.mxu0 0
        %605 = vmatpush1.bf16.msra.mxu0 0
        %606 = vmatprep.subr.bf16.mxu0 0
        %607 = vmatpush1.bf16.msra.mxu0 0
        %608 = vmatprep.subr.bf16.mxu0 0
        %609 = vmatpush1.bf16.msra.mxu0 0
        %610 = vmatprep.subr.bf16.mxu0 0
        %611 = vmatpush1.bf16.msra.mxu0 0
        %612 = vmatprep.subr.bf16.mxu0 0
        %613 = vmatpush1.bf16.msra.mxu0 0
        %614 = vmatprep.subr.bf16.mxu0 0
        %615 = vmatpush1.bf16.msra.mxu0 %v457
        %616 = vmatprep.subr.bf16.mxu0 0
        %617 = vmatpush1.bf16.msra.mxu0 %v454
        %618 = vmatprep.subr.bf16.mxu0 0
        %619 = vmatpush2.bf16.msra.mxu0 0
        %620 = vmatprep.subr.bf16.mxu0 0
        %621 = vmatpush2.bf16.msra.mxu0 0
        %622 = vmatprep.subr.bf16.mxu0 0
        %623 = vmatpush2.bf16.msra.mxu0 0
        %624 = vmatprep.subr.bf16.mxu0 0
        %625 = vmatpush2.bf16.msra.mxu0 0
        %626 = vmatprep.subr.bf16.mxu0 0
        %627 = vmatpush2.bf16.msra.mxu0 0
        %628 = vmatprep.subr.bf16.mxu0 0
        %629 = vmatpush2.bf16.msra.mxu0 0
        %630 = vmatprep.subr.bf16.mxu0 0
        %631 = vmatpush2.bf16.msra.mxu0 0
        %632 = vmatprep.subr.bf16.mxu0 0
        %633 = vmatpush2.bf16.msra.mxu0 0
        %634 = vmatprep.mubr.bf16.mxu0 0
        %635 = vmatmul.mubr.bf16.gmra.mxu0 %v466
        %v636 = vpop.f32.mrf.mxu0
        %v637 = vadd.f32 %v315, %v636
        %v638 = vpop.f32.mrf.mxu0
        %v639 = vpop.f32.mrf.mxu0
        %v640 = vadd.f32 %v320, %v639
        %v641 = vpop.f32.mrf.mxu0
        %642 = vmatprep.mubr.bf16.mxu0 0
        %643 = vmatmul.mubr.bf16.gmra.mxu0 %v469
        %v644 = vpop.f32.mrf.mxu0
        %v645 = vadd.f32 %v325, %v644
        %v646 = vpop.f32.mrf.mxu0
        %v647 = vpop.f32.mrf.mxu0
        %v648 = vadd.f32 %v330, %v647
        %v649 = vpop.f32.mrf.mxu0
        %650 = vmatprep.mubr.bf16.mxu0 0
        %651 = vmatmul.mubr.bf16.gmra.mxu0 %v472
        %v652 = vpop.f32.mrf.mxu0
        %v653 = vadd.f32 %v335, %v652
        %v654 = vpop.f32.mrf.mxu0
        %v655 = vpop.f32.mrf.mxu0
        %v656 = vadd.f32 %v340, %v655
        %v657 = vpop.f32.mrf.mxu0
        %658 = vmatprep.mubr.bf16.mxu0 0
        %659 = vmatmul.mubr.bf16.gmra.mxu0 %v475
        %v660 = vpop.f32.mrf.mxu0
        %v661 = vadd.f32 %v345, %v660
        %v662 = vpop.f32.mrf.mxu0
        %v663 = vpop.f32.mrf.mxu0
        %v664 = vadd.f32 %v350, %v663
        %v665 = vpop.f32.mrf.mxu0
        %666 = vmatprep.mubr.bf16.mxu0 0
        %667 = vmatmul.mubr.bf16.gmra.mxu0 %v478
        %v668 = vpop.f32.mrf.mxu0
        %v669 = vadd.f32 %v355, %v668
        %v670 = vpop.f32.mrf.mxu0
        %v671 = vpop.f32.mrf.mxu0
        %v672 = vadd.f32 %v360, %v671
        %v673 = vpop.f32.mrf.mxu0
        %674 = vmatprep.mubr.bf16.mxu0 0
        %675 = vmatmul.mubr.bf16.gmra.mxu0 %v481
        %v676 = vpop.f32.mrf.mxu0
        %v677 = vadd.f32 %v365, %v676
        %v678 = vpop.f32.mrf.mxu0
        %v679 = vpop.f32.mrf.mxu0
        %v680 = vadd.f32 %v370, %v679
        %v681 = vpop.f32.mrf.mxu0
        %682 = vmatprep.mubr.bf16.mxu0 0
        %683 = vmatmul.mubr.bf16.gmra.mxu0 %v484
        %v684 = vpop.f32.mrf.mxu0
        %v685 = vadd.f32 %v375, %v684
        %v686 = vpop.f32.mrf.mxu0
        %v687 = vpop.f32.mrf.mxu0
        %v688 = vadd.f32 %v380, %v687
        %v689 = vpop.f32.mrf.mxu0
        %690 = vmatprep.mubr.bf16.mxu0 0
        %691 = vmatmul.mubr.bf16.gmra.mxu0 %v487
        %v692 = vpop.f32.mrf.mxu0
        %v693 = vadd.f32 %v385, %v692
        %v694 = vpop.f32.mrf.mxu0
        %v695 = vpop.f32.mrf.mxu0
        %v696 = vadd.f32 %v390, %v695
        %v697 = vpop.f32.mrf.mxu0
        %698 = vdwg.mxu0
        %v699 = vmul.f32 %v524, 0.5
        %v700 = vmul.f32 %v526, 0.5
        %v701 = vmul.f32 %v637, 0.5
        %v702 = vmul.f32 %v528, 0.5
        %v703 = vmul.f32 %v530, 0.5
        %v704 = vmul.f32 %v640, 0.5
        %v705 = vmul.f32 %v534, 0.5
        %v706 = vmul.f32 %v536, 0.5
        %v707 = vmul.f32 %v645, 0.5
        %v708 = vmul.f32 %v538, 0.5
        %v709 = vmul.f32 %v540, 0.5
        %v710 = vmul.f32 %v648, 0.5
        %v711 = vmul.f32 %v544, 0.5
        %v712 = vmul.f32 %v546, 0.5
        %v713 = vmul.f32 %v653, 0.5
        %v714 = vmul.f32 %v548, 0.5
        %v715 = vmul.f32 %v550, 0.5
        %v716 = vmul.f32 %v656, 0.5
        %v717 = vmul.f32 %v554, 0.5
        %v718 = vmul.f32 %v556, 0.5
        %v719 = vmul.f32 %v661, 0.5
        %v720 = vmul.f32 %v558, 0.5
        %v721 = vmul.f32 %v560, 0.5
        %v722 = vmul.f32 %v664, 0.5
        %v723 = vmul.f32 %v564, 0.5
        %v724 = vmul.f32 %v566, 0.5
        %v725 = vmul.f32 %v669, 0.5
        %v726 = vmul.f32 %v568, 0.5
        %v727 = vmul.f32 %v570, 0.5
        %v728 = vmul.f32 %v672, 0.5
        %v729 = vmul.f32 %v574, 0.5
        %v730 = vmul.f32 %v576, 0.5
        %v731 = vmul.f32 %v677, 0.5
        %v732 = vmul.f32 %v578, 0.5
        %v733 = vmul.f32 %v580, 0.5
        %v734 = vmul.f32 %v680, 0.5
        %v735 = vmul.f32 %v584, 0.5
        %v736 = vmul.f32 %v586, 0.5
        %v737 = vmul.f32 %v685, 0.5
        %v738 = vmul.f32 %v588, 0.5
        %v739 = vmul.f32 %v590, 0.5
        %v740 = vmul.f32 %v688, 0.5
        %v741 = vmul.f32 %v594, 0.5
        %v742 = vmul.f32 %v596, 0.5
        %v743 = vmul.f32 %v693, 0.5
        %v744 = vmul.f32 %v598, 0.5
        %v745 = vmul.f32 %v600, 0.5
        %v746 = vmul.f32 %v696, 0.5
        %v747 = vtanh.pop %v699
        %v748 = vtanh.pop %v700
        %v749 = vtanh.pop %v701
        %v750 = vtanh.pop %v702
        %v751 = vtanh.pop %v703
        %v752 = vtanh.pop %v704
        %v753 = vtanh.pop %v705
        %v754 = vtanh.pop %v706
        %v755 = vtanh.pop %v707
        %v756 = vtanh.pop %v708
        %v757 = vtanh.pop %v709
        %v758 = vtanh.pop %v710
        %v759 = vtanh.pop %v711
        %v760 = vtanh.pop %v712
        %v761 = vtanh.pop %v713
        %v762 = vtanh.pop %v714
        %v763 = vtanh.pop %v715
        %v764 = vtanh.pop %v716
        %v765 = vtanh.pop %v717
        %v766 = vtanh.pop %v718
        %v767 = vtanh.pop %v719
        %v768 = vtanh.pop %v720
        %v769 = vtanh.pop %v721
        %v770 = vtanh.pop %v722
        %v771 = vtanh.pop %v723
        %v772 = vtanh.pop %v724
        %v773 = vtanh.pop %v725
        %v774 = vtanh.pop %v726
        %v775 = vtanh.pop %v727
        %v776 = vtanh.pop %v728
        %v777 = vtanh.pop %v729
        %v778 = vtanh.pop %v730
        %v779 = vtanh.pop %v731
        %v780 = vtanh.pop %v732
        %v781 = vtanh.pop %v733
        %v782 = vtanh.pop %v734
        %v783 = vtanh.pop %v735
        %v784 = vtanh.pop %v736
        %v785 = vtanh.pop %v737
        %v786 = vtanh.pop %v738
        %v787 = vtanh.pop %v739
        %v788 = vtanh.pop %v740
        %v789 = vtanh.pop %v741
        %v790 = vtanh.pop %v742
        %v791 = vtanh.pop %v743
        %v792 = vtanh.pop %v744
        %v793 = vtanh.pop %v745
        %v794 = vtanh.pop %v746
        %v795 = vadd.f32 %v747, 1.0
        %v796 = vadd.f32 %v748, 1.0
        %v797 = vadd.f32 %v749, 1.0
        %v798 = vadd.f32 %v750, 1.0
        %v799 = vadd.f32 %v751, 1.0
        %v800 = vadd.f32 %v752, 1.0
        %v801 = vadd.f32 %v753, 1.0
        %v802 = vadd.f32 %v754, 1.0
        %v803 = vadd.f32 %v755, 1.0
        %v804 = vadd.f32 %v756, 1.0
        %v805 = vadd.f32 %v757, 1.0
        %v806 = vadd.f32 %v758, 1.0
        %v807 = vadd.f32 %v759, 1.0
        %v808 = vadd.f32 %v760, 1.0
        %v809 = vadd.f32 %v761, 1.0
        %v810 = vadd.f32 %v762, 1.0
        %v811 = vadd.f32 %v763, 1.0
        %v812 = vadd.f32 %v764, 1.0
        %v813 = vadd.f32 %v765, 1.0
        %v814 = vadd.f32 %v766, 1.0
        %v815 = vadd.f32 %v767, 1.0
        %v816 = vadd.f32 %v768, 1.0
        %v817 = vadd.f32 %v769, 1.0
        %v818 = vadd.f32 %v770, 1.0
        %v819 = vadd.f32 %v771, 1.0
        %v820 = vadd.f32 %v772, 1.0
        %v821 = vadd.f32 %v773, 1.0
        %v822 = vadd.f32 %v774, 1.0
        %v823 = vadd.f32 %v775, 1.0
        %v824 = vadd.f32 %v776, 1.0
        %v825 = vadd.f32 %v777, 1.0
        %v826 = vadd.f32 %v778, 1.0
        %v827 = vadd.f32 %v779, 1.0
        %v828 = vadd.f32 %v780, 1.0
        %v829 = vadd.f32 %v781, 1.0
        %v830 = vadd.f32 %v782, 1.0
        %v831 = vadd.f32 %v783, 1.0
        %v832 = vadd.f32 %v784, 1.0
        %v833 = vadd.f32 %v785, 1.0
        %v834 = vadd.f32 %v786, 1.0
        %v835 = vadd.f32 %v787, 1.0
        %v836 = vadd.f32 %v788, 1.0
        %v837 = vadd.f32 %v789, 1.0
        %v838 = vadd.f32 %v790, 1.0
        %v839 = vadd.f32 %v791, 1.0
        %v840 = vadd.f32 %v792, 1.0
        %v841 = vadd.f32 %v793, 1.0
        %v842 = vadd.f32 %v794, 1.0
        %v843 = vmul.f32 %v699, %v795
        %v844 = vmul.f32 %v700, %v796
        %v845 = vmul.f32 %v701, %v797
        %v846 = vmul.f32 %v702, %v798
        %v847 = vmul.f32 %v703, %v799
        %v848 = vmul.f32 %v704, %v800
        %v849 = vmul.f32 %v705, %v801
        %v850 = vmul.f32 %v706, %v802
        %v851 = vmul.f32 %v707, %v803
        %v852 = vmul.f32 %v708, %v804
        %v853 = vmul.f32 %v709, %v805
        %v854 = vmul.f32 %v710, %v806
        %v855 = vmul.f32 %v711, %v807
        %v856 = vmul.f32 %v712, %v808
        %v857 = vmul.f32 %v713, %v809
        %v858 = vmul.f32 %v714, %v810
        %v859 = vmul.f32 %v715, %v811
        %v860 = vmul.f32 %v716, %v812
        %v861 = vmul.f32 %v717, %v813
        %v862 = vmul.f32 %v718, %v814
        %v863 = vmul.f32 %v719, %v815
        %v864 = vmul.f32 %v720, %v816
        %v865 = vmul.f32 %v721, %v817
        %v866 = vmul.f32 %v722, %v818
        %v867 = vmul.f32 %v723, %v819
        %v868 = vmul.f32 %v724, %v820
        %v869 = vmul.f32 %v725, %v821
        %v870 = vmul.f32 %v726, %v822
        %v871 = vmul.f32 %v727, %v823
        %v872 = vmul.f32 %v728, %v824
        %v873 = vmul.f32 %v729, %v825
        %v874 = vmul.f32 %v730, %v826
        %v875 = vmul.f32 %v731, %v827
        %v876 = vmul.f32 %v732, %v828
        %v877 = vmul.f32 %v733, %v829
        %v878 = vmul.f32 %v734, %v830
        %v879 = vmul.f32 %v735, %v831
        %v880 = vmul.f32 %v736, %v832
        %v881 = vmul.f32 %v737, %v833
        %v882 = vmul.f32 %v738, %v834
        %v883 = vmul.f32 %v739, %v835
        %v884 = vmul.f32 %v740, %v836
        %v885 = vmul.f32 %v741, %v837
        %v886 = vmul.f32 %v742, %v838
        %v887 = vmul.f32 %v743, %v839
        %v888 = vmul.f32 %v744, %v840
        %v889 = vmul.f32 %v745, %v841
        %v890 = vmul.f32 %v746, %v842
        %v891 = vadd.f32 %v843, %v844
        %v892 = vadd.f32 %v891, %v845
        %893 = vadd.xlane.f32.xlu0 %v892
        %v894 = vpop.xlane.xlu0 %893
        %v895 = vadd.f32 %v846, %v847
        %v896 = vadd.f32 %v895, %v848
        %897 = vadd.xlane.f32.xlu0 %v896
        %v898 = vpop.xlane.xlu0 %897
        %v899 = vadd.f32 %v849, %v850
        %v900 = vadd.f32 %v899, %v851
        %901 = vadd.xlane.f32.xlu0 %v900
        %v902 = vpop.xlane.xlu0 %901
        %v903 = vadd.f32 %v852, %v853
        %v904 = vadd.f32 %v903, %v854
        %905 = vadd.xlane.f32.xlu0 %v904
        %v906 = vpop.xlane.xlu0 %905
        %v907 = vadd.f32 %v855, %v856
        %v908 = vadd.f32 %v907, %v857
        %909 = vadd.xlane.f32.xlu0 %v908
        %v910 = vpop.xlane.xlu0 %909
        %v911 = vadd.f32 %v858, %v859
        %v912 = vadd.f32 %v911, %v860
        %913 = vadd.xlane.f32.xlu0 %v912
        %v914 = vpop.xlane.xlu0 %913
        %v915 = vadd.f32 %v861, %v862
        %v916 = vadd.f32 %v915, %v863
        %917 = vadd.xlane.f32.xlu0 %v916
        %v918 = vpop.xlane.xlu0 %917
        %v919 = vadd.f32 %v864, %v865
        %v920 = vadd.f32 %v919, %v866
        %921 = vadd.xlane.f32.xlu0 %v920
        %v922 = vpop.xlane.xlu0 %921
        %v923 = vadd.f32 %v867, %v868
        %v924 = vadd.f32 %v923, %v869
        %925 = vadd.xlane.f32.xlu0 %v924
        %v926 = vpop.xlane.xlu0 %925
        %v927 = vadd.f32 %v870, %v871
        %v928 = vadd.f32 %v927, %v872
        %929 = vadd.xlane.f32.xlu0 %v928
        %v930 = vpop.xlane.xlu0 %929
        %v931 = vadd.f32 %v873, %v874
        %v932 = vadd.f32 %v931, %v875
        %933 = vadd.xlane.f32.xlu0 %v932
        %v934 = vpop.xlane.xlu0 %933
        %v935 = vadd.f32 %v876, %v877
        %v936 = vadd.f32 %v935, %v878
        %937 = vadd.xlane.f32.xlu0 %v936
        %v938 = vpop.xlane.xlu0 %937
        %v939 = vadd.f32 %v879, %v880
        %v940 = vadd.f32 %v939, %v881
        %941 = vadd.xlane.f32.xlu0 %v940
        %v942 = vpop.xlane.xlu0 %941
        %v943 = vadd.f32 %v882, %v883
        %v944 = vadd.f32 %v943, %v884
        %945 = vadd.xlane.f32.xlu0 %v944
        %v946 = vpop.xlane.xlu0 %945
        %v947 = vadd.f32 %v885, %v886
        %v948 = vadd.f32 %v947, %v887
        %949 = vadd.xlane.f32.xlu0 %v948
        %v950 = vpop.xlane.xlu0 %949
        %v951 = vadd.f32 %v888, %v889
        %v952 = vadd.f32 %v951, %v890
        %953 = vadd.xlane.f32.xlu0 %v952
        %v954 = vpop.xlane.xlu0 %953
        %v955 = vadd.f32 %v894, 0.0
        %v956 = vadd.f32 %v898, 0.0
        %v957 = vadd.f32 %v902, 0.0
        %v958 = vadd.f32 %v906, 0.0
        %v959 = vadd.f32 %v910, 0.0
        %v960 = vadd.f32 %v914, 0.0
        %v961 = vadd.f32 %v918, 0.0
        %v962 = vadd.f32 %v922, 0.0
        %v963 = vadd.f32 %v926, 0.0
        %v964 = vadd.f32 %v930, 0.0
        %v965 = vadd.f32 %v934, 0.0
        %v966 = vadd.f32 %v938, 0.0
        %v967 = vadd.f32 %v942, 0.0
        %v968 = vadd.f32 %v946, 0.0
        %v969 = vadd.f32 %v950, 0.0
        %v970 = vadd.f32 %v954, 0.0
        %v971 = vld [vmem:[#allocation2] sm:$0xff]
        %v972 = vld [vmem:[#allocation2 + $0x8] sm:$0xff]
        %v973 = vld [vmem:[#allocation2 + $0x10] sm:$0xff]
        %v974 = vld [vmem:[#allocation2 + $0x18] sm:$0xff]
        %v975 = vld [vmem:[#allocation2 + $0x20] sm:$0xff]
        %v976 = vld [vmem:[#allocation2 + $0x28] sm:$0xff]
        %v977 = vld [vmem:[#allocation2 + $0x30] sm:$0xff]
        %v978 = vld [vmem:[#allocation2 + $0x38] sm:$0xff]
        %v979 = vld [vmem:[#allocation2 + $0x40] sm:$0xff]
        %v980 = vld [vmem:[#allocation2 + $0x48] sm:$0xff]
        %v981 = vld [vmem:[#allocation2 + $0x50] sm:$0xff]
        %v982 = vld [vmem:[#allocation2 + $0x58] sm:$0xff]
        %v983 = vld [vmem:[#allocation2 + $0x60] sm:$0xff]
        %v984 = vld [vmem:[#allocation2 + $0x68] sm:$0xff]
        %v985 = vld [vmem:[#allocation2 + $0x70] sm:$0xff]
        %v986 = vld [vmem:[#allocation2 + $0x78] sm:$0xff]
        %v987 = vadd.f32 %v971, %v955
        %v988 = vadd.f32 %v972, %v956
        %v989 = vadd.f32 %v973, %v957
        %v990 = vadd.f32 %v974, %v958
        %v991 = vadd.f32 %v975, %v959
        %v992 = vadd.f32 %v976, %v960
        %v993 = vadd.f32 %v977, %v961
        %v994 = vadd.f32 %v978, %v962
        %v995 = vadd.f32 %v979, %v963
        %v996 = vadd.f32 %v980, %v964
        %v997 = vadd.f32 %v981, %v965
        %v998 = vadd.f32 %v982, %v966
        %v999 = vadd.f32 %v983, %v967
        %v1000 = vadd.f32 %v984, %v968
        %v1001 = vadd.f32 %v985, %v969
        %v1002 = vadd.f32 %v986, %v970
        %vm1003 = vcmask 7168
        %1004 = vst.msk [vmem:[#allocation2] sm:$0xff] %vm1003, %v987
        %1005 = vst.msk [vmem:[#allocation2 + $0x8] sm:$0xff] %vm1003, %v988
        %1006 = vst.msk [vmem:[#allocation2 + $0x10] sm:$0xff] %vm1003, %v989
        %1007 = vst.msk [vmem:[#allocation2 + $0x18] sm:$0xff] %vm1003, %v990
        %1008 = vst.msk [vmem:[#allocation2 + $0x20] sm:$0xff] %vm1003, %v991
        %1009 = vst.msk [vmem:[#allocation2 + $0x28] sm:$0xff] %vm1003, %v992
        %1010 = vst.msk [vmem:[#allocation2 + $0x30] sm:$0xff] %vm1003, %v993
        %1011 = vst.msk [vmem:[#allocation2 + $0x38] sm:$0xff] %vm1003, %v994
        %1012 = vst.msk [vmem:[#allocation2 + $0x40] sm:$0xff] %vm1003, %v995
        %1013 = vst.msk [vmem:[#allocation2 + $0x48] sm:$0xff] %vm1003, %v996
        %1014 = vst.msk [vmem:[#allocation2 + $0x50] sm:$0xff] %vm1003, %v997
        %1015 = vst.msk [vmem:[#allocation2 + $0x58] sm:$0xff] %vm1003, %v998
        %1016 = vst.msk [vmem:[#allocation2 + $0x60] sm:$0xff] %vm1003, %v999
        %1017 = vst.msk [vmem:[#allocation2 + $0x68] sm:$0xff] %vm1003, %v1000
        %1018 = vst.msk [vmem:[#allocation2 + $0x70] sm:$0xff] %vm1003, %v1001
        %1019 = vst.msk [vmem:[#allocation2 + $0x78] sm:$0xff] %vm1003, %v1002
        // Predicated region
        $region45: #{tpu_custom_call.1} parent=39 // pred_check
          %p1020 = pneg %p251
        $region46: #{tpu_custom_call.1} parent=39 // pred_check_branch
          %1022 = sbr.rel (%p1020) target = $region48
        $region47: #{tpu_custom_call.1} parent=39 // pred_region
          %v1023 = vld [vmem:[#allocation2] sm:$0xff]
          %v1024 = vld [vmem:[#allocation2 + $0x8] sm:$0xff]
          %v1025 = vld [vmem:[#allocation2 + $0x10] sm:$0xff]
          %v1026 = vld [vmem:[#allocation2 + $0x18] sm:$0xff]
          %v1027 = vld [vmem:[#allocation2 + $0x20] sm:$0xff]
          %v1028 = vld [vmem:[#allocation2 + $0x28] sm:$0xff]
          %v1029 = vld [vmem:[#allocation2 + $0x30] sm:$0xff]
          %v1030 = vld [vmem:[#allocation2 + $0x38] sm:$0xff]
          %v1031 = vld [vmem:[#allocation2 + $0x40] sm:$0xff]
          %v1032 = vld [vmem:[#allocation2 + $0x48] sm:$0xff]
          %v1033 = vld [vmem:[#allocation2 + $0x50] sm:$0xff]
          %v1034 = vld [vmem:[#allocation2 + $0x58] sm:$0xff]
          %v1035 = vld [vmem:[#allocation2 + $0x60] sm:$0xff]
          %v1036 = vld [vmem:[#allocation2 + $0x68] sm:$0xff]
          %v1037 = vld [vmem:[#allocation2 + $0x70] sm:$0xff]
          %v1038 = vld [vmem:[#allocation2 + $0x78] sm:$0xff]
          %v1039 = vmul.f32 %v288, 0.5
          %v1040 = vmul.f32 %v289, 0.5
          %v1041 = vmul.f32 %v290, 0.5
          %v1042 = vmul.f32 %v291, 0.5
          %v1043 = vmul.f32 %v292, 0.5
          %v1044 = vmul.f32 %v293, 0.5
          %v1045 = vmul.f32 %v294, 0.5
          %v1046 = vmul.f32 %v295, 0.5
          %v1047 = vmul.f32 %v296, 0.5
          %v1048 = vmul.f32 %v297, 0.5
          %v1049 = vmul.f32 %v298, 0.5
          %v1050 = vmul.f32 %v299, 0.5
          %v1051 = vmul.f32 %v300, 0.5
          %v1052 = vmul.f32 %v301, 0.5
          %v1053 = vmul.f32 %v302, 0.5
          %v1054 = vmul.f32 %v303, 0.5
          %v1055 = vtanh.pop %v1039
          %v1056 = vtanh.pop %v1040
          %v1057 = vtanh.pop %v1041
          %v1058 = vtanh.pop %v1042
          %v1059 = vtanh.pop %v1043
          %v1060 = vtanh.pop %v1044
          %v1061 = vtanh.pop %v1045
          %v1062 = vtanh.pop %v1046
          %v1063 = vtanh.pop %v1047
          %v1064 = vtanh.pop %v1048
          %v1065 = vtanh.pop %v1049
          %v1066 = vtanh.pop %v1050
          %v1067 = vtanh.pop %v1051
          %v1068 = vtanh.pop %v1052
          %v1069 = vtanh.pop %v1053
          %v1070 = vtanh.pop %v1054
          %v1071 = vadd.f32 %v1055, 1.0
          %v1072 = vadd.f32 %v1056, 1.0
          %v1073 = vadd.f32 %v1057, 1.0
          %v1074 = vadd.f32 %v1058, 1.0
          %v1075 = vadd.f32 %v1059, 1.0
          %v1076 = vadd.f32 %v1060, 1.0
          %v1077 = vadd.f32 %v1061, 1.0
          %v1078 = vadd.f32 %v1062, 1.0
          %v1079 = vadd.f32 %v1063, 1.0
          %v1080 = vadd.f32 %v1064, 1.0
          %v1081 = vadd.f32 %v1065, 1.0
          %v1082 = vadd.f32 %v1066, 1.0
          %v1083 = vadd.f32 %v1067, 1.0
          %v1084 = vadd.f32 %v1068, 1.0
          %v1085 = vadd.f32 %v1069, 1.0
          %v1086 = vadd.f32 %v1070, 1.0
          %v1087 = vmul.f32 %v1039, %v1071
          %v1088 = vmul.f32 %v1040, %v1072
          %v1089 = vmul.f32 %v1041, %v1073
          %v1090 = vmul.f32 %v1042, %v1074
          %v1091 = vmul.f32 %v1043, %v1075
          %v1092 = vmul.f32 %v1044, %v1076
          %v1093 = vmul.f32 %v1045, %v1077
          %v1094 = vmul.f32 %v1046, %v1078
          %v1095 = vmul.f32 %v1047, %v1079
          %v1096 = vmul.f32 %v1048, %v1080
          %v1097 = vmul.f32 %v1049, %v1081
          %v1098 = vmul.f32 %v1050, %v1082
          %v1099 = vmul.f32 %v1051, %v1083
          %v1100 = vmul.f32 %v1052, %v1084
          %v1101 = vmul.f32 %v1053, %v1085
          %v1102 = vmul.f32 %v1054, %v1086
          %v1103 = vmul.f32 %v1087, 60.0
          %v1104 = vmul.f32 %v1088, 60.0
          %v1105 = vmul.f32 %v1089, 60.0
          %v1106 = vmul.f32 %v1090, 60.0
          %v1107 = vmul.f32 %v1091, 60.0
          %v1108 = vmul.f32 %v1092, 60.0
          %v1109 = vmul.f32 %v1093, 60.0
          %v1110 = vmul.f32 %v1094, 60.0
          %v1111 = vmul.f32 %v1095, 60.0
          %v1112 = vmul.f32 %v1096, 60.0
          %v1113 = vmul.f32 %v1097, 60.0
          %v1114 = vmul.f32 %v1098, 60.0
          %v1115 = vmul.f32 %v1099, 60.0
          %v1116 = vmul.f32 %v1100, 60.0
          %v1117 = vmul.f32 %v1101, 60.0
          %v1118 = vmul.f32 %v1102, 60.0
          %v1119 = vsub.f32 %v1023, %v1103
          %v1120 = vsub.f32 %v1024, %v1104
          %v1121 = vsub.f32 %v1025, %v1105
          %v1122 = vsub.f32 %v1026, %v1106
          %v1123 = vsub.f32 %v1027, %v1107
          %v1124 = vsub.f32 %v1028, %v1108
          %v1125 = vsub.f32 %v1029, %v1109
          %v1126 = vsub.f32 %v1030, %v1110
          %v1127 = vsub.f32 %v1031, %v1111
          %v1128 = vsub.f32 %v1032, %v1112
          %v1129 = vsub.f32 %v1033, %v1113
          %v1130 = vsub.f32 %v1034, %v1114
          %v1131 = vsub.f32 %v1035, %v1115
          %v1132 = vsub.f32 %v1036, %v1116
          %v1133 = vsub.f32 %v1037, %v1117
          %v1134 = vsub.f32 %v1038, %v1118
          %v1135 = vmul.f32 %v1119, 0.0030864198
          %v1136 = vmul.f32 %v1120, 0.0030864198
          %v1137 = vmul.f32 %v1121, 0.0030864198
          %v1138 = vmul.f32 %v1122, 0.0030864198
          %v1139 = vmul.f32 %v1123, 0.0030864198
          %v1140 = vmul.f32 %v1124, 0.0030864198
          %v1141 = vmul.f32 %v1125, 0.0030864198
          %v1142 = vmul.f32 %v1126, 0.0030864198
          %v1143 = vmul.f32 %v1127, 0.0030864198
          %v1144 = vmul.f32 %v1128, 0.0030864198
          %v1145 = vmul.f32 %v1129, 0.0030864198
          %v1146 = vmul.f32 %v1130, 0.0030864198
          %v1147 = vmul.f32 %v1131, 0.0030864198
          %v1148 = vmul.f32 %v1132, 0.0030864198
          %v1149 = vmul.f32 %v1133, 0.0030864198
          %v1150 = vmul.f32 %v1134, 0.0030864198
          %v1151 = vld [vmem:[%s3] sm:$0xff]
          %v1152 = vld [vmem:[%s3 + $0x8] sm:$0xff]
          %v1153 = vld [vmem:[%s3 + $0x10] sm:$0xff]
          %v1154 = vld [vmem:[%s3 + $0x18] sm:$0xff]
          %v1155 = vld [vmem:[%s3 + $0x20] sm:$0xff]
          %v1156 = vld [vmem:[%s3 + $0x28] sm:$0xff]
          %v1157 = vld [vmem:[%s3 + $0x30] sm:$0xff]
          %v1158 = vld [vmem:[%s3 + $0x38] sm:$0xff]
          %v1159 = vld [vmem:[%s3 + $0x40] sm:$0xff]
          %v1160 = vld [vmem:[%s3 + $0x48] sm:$0xff]
          %v1161 = vld [vmem:[%s3 + $0x50] sm:$0xff]
          %v1162 = vld [vmem:[%s3 + $0x58] sm:$0xff]
          %v1163 = vld [vmem:[%s3 + $0x60] sm:$0xff]
          %v1164 = vld [vmem:[%s3 + $0x68] sm:$0xff]
          %v1165 = vld [vmem:[%s3 + $0x70] sm:$0xff]
          %v1166 = vld [vmem:[%s3 + $0x78] sm:$0xff]
          %1168 = vset.pattern.permute.xlu0 0
          %1169 = vperm.xlu0 %1168, %v1135
          %v1170 = vpop.permute.xlu0 %1169
          %1173 = vset.pattern.permute.xlu0 0
          %1174 = vperm.xlu0 %1173, %v1136
          %v1175 = vpop.permute.xlu0 %1174
          %1178 = vset.pattern.permute.xlu0 0
          %1179 = vperm.xlu0 %1178, %v1137
          %v1180 = vpop.permute.xlu0 %1179
          %1183 = vset.pattern.permute.xlu0 0
          %1184 = vperm.xlu0 %1183, %v1138
          %v1185 = vpop.permute.xlu0 %1184
          %1188 = vset.pattern.permute.xlu0 0
          %1189 = vperm.xlu0 %1188, %v1139
          %v1190 = vpop.permute.xlu0 %1189
          %1193 = vset.pattern.permute.xlu0 0
          %1194 = vperm.xlu0 %1193, %v1140
          %v1195 = vpop.permute.xlu0 %1194
          %1198 = vset.pattern.permute.xlu0 0
          %1199 = vperm.xlu0 %1198, %v1141
          %v1200 = vpop.permute.xlu0 %1199
          %1203 = vset.pattern.permute.xlu0 0
          %1204 = vperm.xlu0 %1203, %v1142
          %v1205 = vpop.permute.xlu0 %1204
          %1208 = vset.pattern.permute.xlu0 0
          %1209 = vperm.xlu0 %1208, %v1143
          %v1210 = vpop.permute.xlu0 %1209
          %1213 = vset.pattern.permute.xlu0 0
          %1214 = vperm.xlu0 %1213, %v1144
          %v1215 = vpop.permute.xlu0 %1214
          %1218 = vset.pattern.permute.xlu0 0
          %1219 = vperm.xlu0 %1218, %v1145
          %v1220 = vpop.permute.xlu0 %1219
          %1223 = vset.pattern.permute.xlu0 0
          %1224 = vperm.xlu0 %1223, %v1146
          %v1225 = vpop.permute.xlu0 %1224
          %1228 = vset.pattern.permute.xlu0 0
          %1229 = vperm.xlu0 %1228, %v1147
          %v1230 = vpop.permute.xlu0 %1229
          %1233 = vset.pattern.permute.xlu0 0
          %1234 = vperm.xlu0 %1233, %v1148
          %v1235 = vpop.permute.xlu0 %1234
          %1238 = vset.pattern.permute.xlu0 0
          %1239 = vperm.xlu0 %1238, %v1149
          %v1240 = vpop.permute.xlu0 %1239
          %1243 = vset.pattern.permute.xlu0 0
          %1244 = vperm.xlu0 %1243, %v1150
          %v1245 = vpop.permute.xlu0 %1244
          %v1247 = vmul.f32 %v1151, %v1170
          %v1248 = vmul.f32 %v1152, %v1175
          %v1249 = vmul.f32 %v1153, %v1180
          %v1250 = vmul.f32 %v1154, %v1185
          %v1251 = vmul.f32 %v1155, %v1190
          %v1252 = vmul.f32 %v1156, %v1195
          %v1253 = vmul.f32 %v1157, %v1200
          %v1254 = vmul.f32 %v1158, %v1205
          %v1255 = vmul.f32 %v1159, %v1210
          %v1256 = vmul.f32 %v1160, %v1215
          %v1257 = vmul.f32 %v1161, %v1220
          %v1258 = vmul.f32 %v1162, %v1225
          %v1259 = vmul.f32 %v1163, %v1230
          %v1260 = vmul.f32 %v1164, %v1235
          %v1261 = vmul.f32 %v1165, %v1240
          %v1262 = vmul.f32 %v1166, %v1245
          %vm1263 = vcmask 31744
          %v1264 = vsel %vm1263, %v1247, 0.0
          %v1265 = vsel %vm1263, %v1248, 0.0
          %v1266 = vadd.f32 %v1264, %v1265
          %v1267 = vsel %vm1263, %v1249, 0.0
          %v1268 = vadd.f32 %v1266, %v1267
          %v1269 = vsel %vm1263, %v1250, 0.0
          %v1270 = vadd.f32 %v1268, %v1269
          %v1271 = vsel %vm1263, %v1251, 0.0
          %v1272 = vadd.f32 %v1270, %v1271
          %v1273 = vsel %vm1263, %v1252, 0.0
          %v1274 = vadd.f32 %v1272, %v1273
          %v1275 = vsel %vm1263, %v1253, 0.0
          %v1276 = vadd.f32 %v1274, %v1275
          %v1277 = vsel %vm1263, %v1254, 0.0
          %v1278 = vadd.f32 %v1276, %v1277
          %v1279 = vsel %vm1263, %v1255, 0.0
          %v1280 = vadd.f32 %v1278, %v1279
          %v1281 = vsel %vm1263, %v1256, 0.0
          %v1282 = vadd.f32 %v1280, %v1281
          %v1283 = vsel %vm1263, %v1257, 0.0
          %v1284 = vadd.f32 %v1282, %v1283
          %v1285 = vsel %vm1263, %v1258, 0.0
          %v1286 = vadd.f32 %v1284, %v1285
          %v1287 = vsel %vm1263, %v1259, 0.0
          %v1288 = vadd.f32 %v1286, %v1287
          %v1289 = vsel %vm1263, %v1260, 0.0
          %v1290 = vadd.f32 %v1288, %v1289
          %v1291 = vsel %vm1263, %v1261, 0.0
          %v1292 = vadd.f32 %v1290, %v1291
          %v1293 = vsel %vm1263, %v1262, 0.0
          %v1294 = vadd.f32 %v1292, %v1293
          %v1295 = vrot.slane %v1294, 4
          %v1296 = vadd.f32 %v1294, %v1295
          %v1297 = vrot.slane %v1296, 2
          %v1298 = vadd.f32 %v1296, %v1297
          %v1299 = vrot.slane %v1298, 1
          %v1300 = vadd.f32 %v1298, %v1299
          %v1301 = vld [vmem:[%s4] sm:$0x1]
          %v1302 = vadd.f32 %v1300, %v1301
          %vm1303 = vcmask 24576
          %1304 = vst.msk [vmem:[%s239] sm:$0x1] %vm1303, %v1302
        $region48: #{tpu_custom_call.1} parent=39 // pred_fallthru
          _
        %s1305 = sand.u32 %s151, 1
        %s1306 = scalar_lea.sflag [#allocation4], %s1305
        %s1307 = sand.u32 %s151, 1
        %s1308 = scalar_lea.vmem [#allocation3], %s1307
        // Predicated region
        $region49: #{tpu_custom_call.1} parent=39 // pred_check
          %p1309 = pneg %p161
        $region50: #{tpu_custom_call.1} parent=39 // pred_check_branch
          %1311 = sbr.rel (%p1309) target = $region52
        $region51: #{tpu_custom_call.1} parent=39 // pred_region
          %s1313 = ssub.s32 16, 16
          %1314 = vsyncadd %s1306, %s1313
          %s1315 = smul.addr %s23, 16
          %s1316 = scalar_lea.hbm %s5, %s1315
          %s1318 = sshll.u32 %s1308, 4
          %s1319 = int_to_ptr.vmem [resolvable:$true] %s1318
          %1321 = dma.vmem_to_hbm [thread:$0]  %s1319, 16, %s1316, %s1306
        $region52: #{tpu_custom_call.1} parent=39 // pred_fallthru
          _
      $region40: #{tpu_custom_call.1} parent=5 // pred_fallthru
        _
      %p1322 = scmp.le.s32.totalorder 2, %s14
      // Predicated region
      $region53: #{tpu_custom_call.1} parent=5 // pred_check
        %p1323 = pneg %p1322
      $region54: #{tpu_custom_call.1} parent=5 // pred_check_branch
        %1325 = sbr.rel (%p1323) target = $region56
      $region55: #{tpu_custom_call.1} parent=5 // pred_region
        %s1326 = ssub.s32 %s14, 2
        // Predicated region
        $region57: #{tpu_custom_call.1} parent=55 // pred_check
          %p1327 = pneg %p167
        $region58: #{tpu_custom_call.1} parent=55 // pred_check_branch
          %1329 = sbr.rel (%p1327) target = $region60
        $region59: #{tpu_custom_call.1} parent=55 // pred_region
          %s1330 = sand.u32 %s152, 1
          %s1331 = scalar_lea.sflag [#allocation4], %s1330
          %s1332 = sand.u32 %s152, 1
          %s1333 = scalar_lea.vmem [#allocation3], %s1332
          %1334 = dma.done %s1331, 16
        $region60: #{tpu_custom_call.1} parent=55 // pred_fallthru
          _
      $region56: #{tpu_custom_call.1} parent=5 // pred_fallthru
        _
    $region6: #{tpu_custom_call.1} parent=1 // loop_footer
      %s18 = sadd.s32 1, %s14
    $region7: #{tpu_custom_call.1} parent=1 // loop_footer_branch
      %13 = sbr.rel target = $region3
    $region8: #{tpu_custom_call.1} parent=1 // loop_exit
      _
    %1335 = vsyncpa [#allocation4], 1
    %s1336 = scalar_lea.sflag [#allocation4], 1
    %1337 = vsyncpa %s1336, 1

</llo_original>
